<compile_context>
chip_gen: v7x
topology: tpu7x:2x2x1
jax: 0.10.0
libtpu: 0.0.40
codegen_flags: <defaults>
</compile_context>

<pallas_src>
import math

import jax
import jax.numpy as jnp
from jax import lax
from jax.experimental import pallas as pl
from jax.experimental.pallas import tpu as pltpu


def _resblock_kernel(x_ref, g_ref, b_ref, w1_ref, b1_ref, w2_ref, b2_ref, o_ref):
    # x_ref: (TM, H) tile of flattened tokens. All elementwise math in f32.
    x = x_ref[...].astype(jnp.float32)

    # LayerNorm over the hidden (lane) axis, eps = 1e-5 (PyTorch default).
    mean = jnp.mean(x, axis=-1, keepdims=True)
    var = jnp.mean((x - mean) ** 2, axis=-1, keepdims=True)
    xn = (x - mean) * lax.rsqrt(var + 1e-5)
    xn = xn * g_ref[...] + b_ref[...]              # (TM,H) * (1,H) + (1,H)

    # Matmul operand dtype follows the weights (f32 or bf16); accumulate in f32.
    mxu_dt = w1_ref.dtype
    nt_dims = (((1,), (1,)), ((), ()))             # contract hidden with W's 'in' axis

    # h = xn @ W1^T + b1  (W1 kept in PyTorch (out, in) layout; NT matmul on MXU)
    h = lax.dot_general(xn.astype(mxu_dt), w1_ref[...], dimension_numbers=nt_dims,
                        preferred_element_type=jnp.float32) + b1_ref[...]
    # Exact erf-based GELU (nn.GELU default) - runs on the EUP, free under MXU.
    h = 0.5 * h * (1.0 + lax.erf(h * (1.0 / math.sqrt(2.0))))
    # y = h @ W2^T + b2
    y = lax.dot_general(h.astype(mxu_dt), w2_ref[...], dimension_numbers=nt_dims,
                        preferred_element_type=jnp.float32) + b2_ref[...]

    # Residual from the *normed* x, exactly as the PyTorch forward does.
    o_ref[...] = (xn + y).astype(o_ref.dtype)


def simple_res_block(x, gamma, beta, w1, b1, w2, b2, *, tile_rows=256, mxu_dtype=None):
    """Fused LayerNorm + MLP + residual.

    x: (..., H). w1/w2: (H, H) in PyTorch (out, in) layout; b1/b2/gamma/beta: (H,).
    mxu_dtype: dtype for the matmul operands (default: bf16 if x is bf16 else f32).
    Returns the same shape/dtype as x.
    """
    orig_shape = x.shape
    H = orig_shape[-1]
    x2d = x.reshape(-1, H)
    N = x2d.shape[0]

    x_dtype = jnp.dtype(x.dtype)
    if mxu_dtype is None:
        mxu_dtype = jnp.bfloat16 if x_dtype == jnp.dtype(jnp.bfloat16) else jnp.float32
    mxu_dtype = jnp.dtype(mxu_dtype)

    # Row tile: big enough to keep the MXU busy, aligned to the sublane packing
    # granularity of the input dtype, but never larger than the (rounded) row count.
    row_align = {4: 8, 2: 16, 1: 32}[x_dtype.itemsize]
    tr = max(row_align, ((int(tile_rows) + row_align - 1) // row_align) * row_align)
    n_rounded = pl.cdiv(N, row_align) * row_align
    tile = min(tr, n_rounded)

    # Pad ragged row counts to a multiple of the tile (zero rows are harmless for
    # LayerNorm: variance 0 -> output beta -> sliced off below).
    n_pad = pl.cdiv(N, tile) * tile
    if n_pad != N:
        x2d = jnp.pad(x2d, ((0, n_pad - N), (0, 0)))

    # Weights stay in (out, in) layout (no HBM transpose); cast once for the MXU.
    w1_k = jnp.asarray(w1).astype(mxu_dtype)
    w2_k = jnp.asarray(w2).astype(mxu_dtype)
    # LayerNorm affine and biases applied in f32.
    g2 = jnp.asarray(gamma).reshape(1, H).astype(jnp.float32)
    be2 = jnp.asarray(beta).reshape(1, H).astype(jnp.float32)
    b1_2 = jnp.asarray(b1).reshape(1, H).astype(jnp.float32)
    b2_2 = jnp.asarray(b2).reshape(1, H).astype(jnp.float32)

    grid = (n_pad // tile,)
    const = lambda i: (0, 0)

    # Rough VMEM budget: double-buffered weights + I/O tiles + f32 intermediates.
    est = 2 * (H * H * mxu_dtype.itemsize) * 2          # W1, W2 (x2 buffers)
    est += 2 * (tile * H * x_dtype.itemsize) * 2        # x tile + out tile (x2 buffers)
    est += 4 * H * 4 * 2                                 # gamma/beta/b1/b2
    est += 3 * tile * H * 4                              # xn / h / y intermediates
    vmem_limit = int(est * 1.25) if est > (24 << 20) else None

    out = pl.pallas_call(
        _resblock_kernel,
        out_shape=jax.ShapeDtypeStruct((n_pad, H), x.dtype),
        grid_spec=pltpu.PrefetchScalarGridSpec(
            num_scalar_prefetch=0,
            grid=grid,
            in_specs=[
                pl.BlockSpec((tile, H), lambda i: (i, 0)),  # x tile
                pl.BlockSpec((1, H), const),                # gamma
                pl.BlockSpec((1, H), const),                # beta
                pl.BlockSpec((H, H), const),                # W1 (out, in)
                pl.BlockSpec((1, H), const),                # b1
                pl.BlockSpec((H, H), const),                # W2 (out, in)
                pl.BlockSpec((1, H), const),                # b2
            ],
            out_specs=pl.BlockSpec((tile, H), lambda i: (i, 0)),
        ),
        compiler_params=pltpu.CompilerParams(
            dimension_semantics=("parallel",),
            vmem_limit_bytes=vmem_limit,
        ),
    )(x2d, g2, be2, w1_k, b1_2, w2_k, b2_2)

    if n_pad != N:
        out = out[:N]
    return out.reshape(orig_shape)


def _reference(x, gamma, beta, w1, b1, w2, b2):
    x = x.astype(jnp.float32)
    mean = jnp.mean(x, -1, keepdims=True)
    var = jnp.mean((x - mean) ** 2, -1, keepdims=True)
    xn = (x - mean) / jnp.sqrt(var + 1e-5) * gamma + beta
    hp = lax.Precision.HIGHEST
    h = jnp.dot(xn, w1.T, precision=hp) + b1
    h = 0.5 * h * (1.0 + lax.erf(h / math.sqrt(2.0)))
    return xn + (jnp.dot(h, w2.T, precision=hp) + b2)


if __name__ == "__main__":
    # Small shapes implied by the forward: (batch, seq, hidden).
    B, S, H = 2, 8, 32
    key = jax.random.PRNGKey(0)
    kx, kw1, kb1, kw2, kb2, kx2 = jax.random.split(key, 6)

    x = jax.random.normal(kx, (B, S, H), dtype=jnp.float32)

    # Deterministic synthetic parameters (PyTorch-style init).
    gamma = jnp.ones((H,), jnp.float32)
    beta = jnp.zeros((H,), jnp.float32)
    scale = 1.0 / math.sqrt(H)
    w1 = jax.random.uniform(kw1, (H, H), jnp.float32, -scale, scale)   # (out, in)
    b1 = jax.random.uniform(kb1, (H,), jnp.float32, -scale, scale)
    w2 = jax.random.uniform(kw2, (H, H), jnp.float32, -scale, scale)   # (out, in)
    b2 = jax.random.uniform(kb2, (H,), jnp.float32, -scale, scale)

    # 1) f32 path (exact module semantics).
    out = jax.block_until_ready(simple_res_block(x, gamma, beta, w1, b1, w2, b2))
    ref = _reference(x, gamma, beta, w1, b1, w2, b2)
    assert out.shape == x.shape and out.dtype == x.dtype
    assert jnp.max(jnp.abs(out.astype(jnp.float32) - ref)) < 1e-3

    # 2) Ragged row count (exercises the padded-tail path).
    xr = jax.random.normal(kx2, (3, 5, H), dtype=jnp.float32)
    out_r = jax.block_until_ready(simple_res_block(xr, gamma, beta, w1, b1, w2, b2))
    ref_r = _reference(xr, gamma, beta, w1, b1, w2, b2)
    assert out_r.shape == xr.shape
    assert jnp.max(jnp.abs(out_r.astype(jnp.float32) - ref_r)) < 1e-3

    # 3) bf16 input -> bf16 MXU operands with f32 accumulation.
    xb = x.astype(jnp.bfloat16)
    out_b = jax.block_until_ready(simple_res_block(xb, gamma, beta, w1, b1, w2, b2))
    ref_b = _reference(xb.astype(jnp.float32), gamma, beta, w1, b1, w2, b2)
    assert out_b.dtype == jnp.bfloat16 and out_b.shape == x.shape
    assert jnp.max(jnp.abs(out_b.astype(jnp.float32) - ref_b)) < 2e-1

    print("KERNEL_OK")
</pallas_src>

<mosaic_0001>
module attributes {stable_mosaic.version = 11 : i64} {
  func.func @_resblock_kernel(%arg0: i32, %arg1: memref<16x32xf32, #tpu.memory_space<vmem>>, %arg2: memref<1x32xf32, #tpu.memory_space<vmem>>, %arg3: memref<1x32xf32, #tpu.memory_space<vmem>>, %arg4: memref<32x32xf32, #tpu.memory_space<vmem>>, %arg5: memref<1x32xf32, #tpu.memory_space<vmem>>, %arg6: memref<32x32xf32, #tpu.memory_space<vmem>>, %arg7: memref<1x32xf32, #tpu.memory_space<vmem>>, %arg8: memref<16x32xf32, #tpu.memory_space<vmem>>) attributes {dimension_semantics = [#tpu.dimension_semantics<parallel>], iteration_bounds = array<i64: 1>, scalar_prefetch = 0 : i64, scratch_operands = 0 : i64, tpu.core_type = #tpu.core_type<tc>, window_params = [{transform_indices = @transform_0, window_bounds = array<i64: 16, 32>}, {pipeline_mode = #tpu.pipeline_mode<synchronous>, transform_indices = @transform_1, window_bounds = array<i64: 1, 32>}, {pipeline_mode = #tpu.pipeline_mode<synchronous>, transform_indices = @transform_2, window_bounds = array<i64: 1, 32>}, {pipeline_mode = #tpu.pipeline_mode<synchronous>, transform_indices = @transform_3, window_bounds = array<i64: 32, 32>}, {pipeline_mode = #tpu.pipeline_mode<synchronous>, transform_indices = @transform_4, window_bounds = array<i64: 1, 32>}, {pipeline_mode = #tpu.pipeline_mode<synchronous>, transform_indices = @transform_5, window_bounds = array<i64: 32, 32>}, {pipeline_mode = #tpu.pipeline_mode<synchronous>, transform_indices = @transform_6, window_bounds = array<i64: 1, 32>}, {transform_indices = @transform_7, window_bounds = array<i64: 16, 32>}]} {
    %c0 = arith.constant 0 : index
    %c0_0 = arith.constant 0 : index
    %0 = vector.load %arg1[%c0, %c0_0] : memref<16x32xf32, #tpu.memory_space<vmem>>, vector<16x32xf32>
    %cst = arith.constant dense<0.000000e+00> : vector<16xf32>
    %1 = vector.multi_reduction <add>, %0, %cst [1] : vector<16x32xf32> to vector<16xf32>
    %2 = vector.shape_cast %1 : vector<16xf32> to vector<16x1xf32>
    %cst_1 = arith.constant 3.200000e+01 : f32
    %3 = vector.broadcast %cst_1 : f32 to vector<16x1xf32>
    %4 = arith.divf %2, %3 : vector<16x1xf32>
    %5 = vector.broadcast %4 : vector<16x1xf32> to vector<16x32xf32>
    %6 = arith.subf %0, %5 : vector<16x32xf32>
    %7 = arith.mulf %6, %6 : vector<16x32xf32>
    %cst_2 = arith.constant dense<0.000000e+00> : vector<16xf32>
    %8 = vector.multi_reduction <add>, %7, %cst_2 [1] : vector<16x32xf32> to vector<16xf32>
    %9 = vector.shape_cast %8 : vector<16xf32> to vector<16x1xf32>
    %cst_3 = arith.constant 3.200000e+01 : f32
    %10 = vector.broadcast %cst_3 : f32 to vector<16x1xf32>
    %11 = arith.divf %9, %10 : vector<16x1xf32>
    %12 = vector.broadcast %4 : vector<16x1xf32> to vector<16x32xf32>
    %13 = arith.subf %0, %12 : vector<16x32xf32>
    %cst_4 = arith.constant 9.99999974E-6 : f32
    %14 = vector.broadcast %cst_4 : f32 to vector<16x1xf32>
    %15 = arith.addf %11, %14 : vector<16x1xf32>
    %16 = math.rsqrt %15 : vector<16x1xf32>
    %17 = vector.broadcast %16 : vector<16x1xf32> to vector<16x32xf32>
    %18 = arith.mulf %13, %17 : vector<16x32xf32>
    %c0_5 = arith.constant 0 : index
    %c0_6 = arith.constant 0 : index
    %19 = vector.load %arg2[%c0_5, %c0_6] : memref<1x32xf32, #tpu.memory_space<vmem>>, vector<1x32xf32>
    %20 = vector.broadcast %19 : vector<1x32xf32> to vector<16x32xf32>
    %21 = arith.mulf %18, %20 : vector<16x32xf32>
    %c0_7 = arith.constant 0 : index
    %c0_8 = arith.constant 0 : index
    %22 = vector.load %arg3[%c0_7, %c0_8] : memref<1x32xf32, #tpu.memory_space<vmem>>, vector<1x32xf32>
    %23 = vector.broadcast %22 : vector<1x32xf32> to vector<16x32xf32>
    %24 = arith.addf %21, %23 : vector<16x32xf32>
    %c0_9 = arith.constant 0 : index
    %c0_10 = arith.constant 0 : index
    %25 = vector.load %arg4[%c0_9, %c0_10] : memref<32x32xf32, #tpu.memory_space<vmem>>, vector<32x32xf32>
    %cst_11 = arith.constant dense<0.000000e+00> : vector<16x32xf32>
    %26 = tpu.matmul %24, %25, %cst_11 {dimension_numbers = #tpu.dot_dimension_numbers<[1], [1], [0], [0], [0, 0, 1, 0], [], []>} : vector<16x32xf32>, vector<32x32xf32>, vector<16x32xf32> -> vector<16x32xf32>
    %c0_12 = arith.constant 0 : index
    %c0_13 = arith.constant 0 : index
    %27 = vector.load %arg5[%c0_12, %c0_13] : memref<1x32xf32, #tpu.memory_space<vmem>>, vector<1x32xf32>
    %28 = vector.broadcast %27 : vector<1x32xf32> to vector<16x32xf32>
    %29 = arith.addf %26, %28 : vector<16x32xf32>
    %cst_14 = arith.constant 5.000000e-01 : f32
    %30 = vector.broadcast %cst_14 : f32 to vector<16x32xf32>
    %31 = arith.mulf %30, %29 : vector<16x32xf32>
    %cst_15 = arith.constant 0.707106769 : f32
    %32 = vector.broadcast %cst_15 : f32 to vector<16x32xf32>
    %33 = arith.mulf %29, %32 : vector<16x32xf32>
    %34 = math.erf %33 : vector<16x32xf32>
    %cst_16 = arith.constant 1.000000e+00 : f32
    %35 = vector.broadcast %cst_16 : f32 to vector<16x32xf32>
    %36 = arith.addf %35, %34 : vector<16x32xf32>
    %37 = arith.mulf %31, %36 : vector<16x32xf32>
    %c0_17 = arith.constant 0 : index
    %c0_18 = arith.constant 0 : index
    %38 = vector.load %arg6[%c0_17, %c0_18] : memref<32x32xf32, #tpu.memory_space<vmem>>, vector<32x32xf32>
    %cst_19 = arith.constant dense<0.000000e+00> : vector<16x32xf32>
    %39 = tpu.matmul %37, %38, %cst_19 {dimension_numbers = #tpu.dot_dimension_numbers<[1], [1], [0], [0], [0, 0, 1, 0], [], []>} : vector<16x32xf32>, vector<32x32xf32>, vector<16x32xf32> -> vector<16x32xf32>
    %c0_20 = arith.constant 0 : index
    %c0_21 = arith.constant 0 : index
    %40 = vector.load %arg7[%c0_20, %c0_21] : memref<1x32xf32, #tpu.memory_space<vmem>>, vector<1x32xf32>
    %41 = vector.broadcast %40 : vector<1x32xf32> to vector<16x32xf32>
    %42 = arith.addf %39, %41 : vector<16x32xf32>
    %43 = arith.addf %24, %42 : vector<16x32xf32>
    %c0_22 = arith.constant 0 : index
    %c0_23 = arith.constant 0 : index
    %44 = vector.load %arg8[%c0_22, %c0_23] : memref<16x32xf32, #tpu.memory_space<vmem>>, vector<16x32xf32>
    tpu.vector_store %arg8[%c0_22, %c0_23], %43 {strides = array<i32>} : memref<16x32xf32, #tpu.memory_space<vmem>>, vector<16x32xf32>,
    return
  }
  func.func @transform_0(%arg0: i32) -> (i32, i32) {
    %c0_i32 = arith.constant 0 : i32
    %c0_i32_0 = arith.constant 0 : i32
    return %arg0, %c0_i32 : i32, i32
  }
  func.func @transform_1(%arg0: i32) -> (i32, i32) {
    %c0_i32 = arith.constant 0 : i32
    %c0_i32_0 = arith.constant 0 : i32
    %c0_i32_1 = arith.constant 0 : i32
    return %c0_i32, %c0_i32_0 : i32, i32
  }
  func.func @transform_2(%arg0: i32) -> (i32, i32) {
    %c0_i32 = arith.constant 0 : i32
    %c0_i32_0 = arith.constant 0 : i32
    %c0_i32_1 = arith.constant 0 : i32
    return %c0_i32, %c0_i32_0 : i32, i32
  }
  func.func @transform_3(%arg0: i32) -> (i32, i32) {
    %c0_i32 = arith.constant 0 : i32
    %c0_i32_0 = arith.constant 0 : i32
    %c0_i32_1 = arith.constant 0 : i32
    return %c0_i32, %c0_i32_0 : i32, i32
  }
  func.func @transform_4(%arg0: i32) -> (i32, i32) {
    %c0_i32 = arith.constant 0 : i32
    %c0_i32_0 = arith.constant 0 : i32
    %c0_i32_1 = arith.constant 0 : i32
    return %c0_i32, %c0_i32_0 : i32, i32
  }
  func.func @transform_5(%arg0: i32) -> (i32, i32) {
    %c0_i32 = arith.constant 0 : i32
    %c0_i32_0 = arith.constant 0 : i32
    %c0_i32_1 = arith.constant 0 : i32
    return %c0_i32, %c0_i32_0 : i32, i32
  }
  func.func @transform_6(%arg0: i32) -> (i32, i32) {
    %c0_i32 = arith.constant 0 : i32
    %c0_i32_0 = arith.constant 0 : i32
    %c0_i32_1 = arith.constant 0 : i32
    return %c0_i32, %c0_i32_0 : i32, i32
  }
  func.func @transform_7(%arg0: i32) -> (i32, i32) {
    %c0_i32 = arith.constant 0 : i32
    %c0_i32_0 = arith.constant 0 : i32
    return %arg0, %c0_i32 : i32, i32
  }
}

</mosaic_0001>

<llo_original>
// kernel: tpu_custom_call.1
$region0: #{tpu_custom_call.1}
  #allocation0 [shape = 'u32[]', space=smem, size = 0x4, offset = 0x4, fixed_abs, tag = 'smem constant byte address 0x4 - core index']
  #allocation1 [shape = 'u32[144,128]{1,0:T(1,128)}', space=vmem, size = 0x12000, scoped, tag = 'internal scratch']
  %s0 = inlined_call_operand.hbm [shape: f32[16,32], index: 0, kind: input, shape index: {}]
  %s1 = inlined_call_operand.vmem [shape: f32[1,32], index: 1, kind: input, shape index: {}]
  %s2 = inlined_call_operand.vmem [shape: f32[1,32], index: 2, kind: input, shape index: {}]
  %s3 = inlined_call_operand.hbm [shape: f32[32,32], index: 3, kind: input, shape index: {}]
  %s4 = inlined_call_operand.vmem [shape: f32[1,32], index: 4, kind: input, shape index: {}]
  %s5 = inlined_call_operand.hbm [shape: f32[32,32], index: 5, kind: input, shape index: {}]
  %s6 = inlined_call_operand.vmem [shape: f32[1,32], index: 6, kind: input, shape index: {}]
  %s7 = inlined_call_operand.hbm [shape: f32[16,32], index: 7, kind: output, shape index: {}]
  %s8 = sld [smem:[#allocation0]]
  $region50: #{tpu_custom_call.1} parent=0
    _
  %s10 = ssub.s32 1, %s8
  %s11 = scalar_select 0, %s10, %s8
  $region1: #{tpu_custom_call.1} parent=0
    #allocation2 [shape = 'u8[8192]{0}', space=vmem, size = 0x2000, scoped, tag = 'input window, operand 0, single buffered']
    #allocation3 [shape = 's32[1]{0}', space=sflag, size = 0x4, scoped, tag = 'scoped memory for tpu_custom_call.1']
    #allocation4 [shape = 's32[1]{0}', space=sflag, size = 0x4, scoped, tag = 'scoped memory for tpu_custom_call.1']
    #allocation5 [shape = 'u8[16384]{0}', space=vmem, size = 0x4000, scoped, tag = 'input window, operand 3, single buffered']
    #allocation6 [shape = 's32[1]{0}', space=sflag, size = 0x4, scoped, tag = 'scoped memory for tpu_custom_call.1']
    #allocation7 [shape = 'u8[16384]{0}', space=vmem, size = 0x4000, scoped, tag = 'input window, operand 5, single buffered']
    #allocation8 [shape = 'u8[8192]{0}', space=vmem, size = 0x2000, scoped, tag = 'output window, operand 0, single buffered']
    %12 = vsyncpa [#allocation3], 0
    %13 = vsyncpa [#allocation6], 0
    %14 = vsyncpa [#allocation4], 0
    // Predicated region
    $region2: #{tpu_custom_call.1} parent=1 // pred_check
      _
    $region3: #{tpu_custom_call.1} parent=1 // pred_check_branch
      %16 = sbr.rel (0) target = $region5
    $region4: #{tpu_custom_call.1} parent=1 // pred_region
      %s18 = ssub.s32 256, 256
      %19 = vsyncadd [#allocation3], %s18
      %s20 = sshll.u32 [#allocation2], 4
      %s21 = int_to_ptr.vmem [resolvable:$true] %s20
      %26 = dma.hbm_to_vmem [thread:$0]  %s0, 256, %s21, [#allocation3], 128, 128, 8
    $region5: #{tpu_custom_call.1} parent=1 // pred_fallthru
      _
    // Predicated region
    $region6: #{tpu_custom_call.1} parent=1 // pred_check
      _
    $region7: #{tpu_custom_call.1} parent=1 // pred_check_branch
      %28 = sbr.rel (0) target = $region9
    $region8: #{tpu_custom_call.1} parent=1 // pred_region
      _
    $region9: #{tpu_custom_call.1} parent=1 // pred_fallthru
      _
    // Predicated region
    $region10: #{tpu_custom_call.1} parent=1 // pred_check
      _
    $region11: #{tpu_custom_call.1} parent=1 // pred_check_branch
      %30 = sbr.rel (0) target = $region13
    $region12: #{tpu_custom_call.1} parent=1 // pred_region
      _
    $region13: #{tpu_custom_call.1} parent=1 // pred_fallthru
      _
    // Predicated region
    $region14: #{tpu_custom_call.1} parent=1 // pred_check
      _
    $region15: #{tpu_custom_call.1} parent=1 // pred_check_branch
      %32 = sbr.rel (0) target = $region17
    $region16: #{tpu_custom_call.1} parent=1 // pred_region
      %s34 = ssub.s32 512, 512
      %35 = vsyncadd [#allocation6], %s34
      %s36 = sshll.u32 [#allocation5], 4
      %s37 = int_to_ptr.vmem [resolvable:$true] %s36
      %42 = dma.hbm_to_vmem [thread:$0]  %s3, 512, %s37, [#allocation6], 128, 128, 8
    $region17: #{tpu_custom_call.1} parent=1 // pred_fallthru
      _
    // Predicated region
    $region18: #{tpu_custom_call.1} parent=1 // pred_check
      _
    $region19: #{tpu_custom_call.1} parent=1 // pred_check_branch
      %44 = sbr.rel (0) target = $region21
    $region20: #{tpu_custom_call.1} parent=1 // pred_region
      _
    $region21: #{tpu_custom_call.1} parent=1 // pred_fallthru
      _
    // Predicated region
    $region22: #{tpu_custom_call.1} parent=1 // pred_check
      _
    $region23: #{tpu_custom_call.1} parent=1 // pred_check_branch
      %46 = sbr.rel (0) target = $region25
    $region24: #{tpu_custom_call.1} parent=1 // pred_region
      %s48 = ssub.s32 512, 512
      %49 = vsyncadd [#allocation6], %s48
      %s50 = sshll.u32 [#allocation7], 4
      %s51 = int_to_ptr.vmem [resolvable:$true] %s50
      %56 = dma.hbm_to_vmem [thread:$0]  %s5, 512, %s51, [#allocation6], 128, 128, 8
    $region25: #{tpu_custom_call.1} parent=1 // pred_fallthru
      _
    // Predicated region
    $region26: #{tpu_custom_call.1} parent=1 // pred_check
      _
    $region27: #{tpu_custom_call.1} parent=1 // pred_check_branch
      %58 = sbr.rel (0) target = $region29
    $region28: #{tpu_custom_call.1} parent=1 // pred_region
      _
    $region29: #{tpu_custom_call.1} parent=1 // pred_fallthru
      _
    // Predicated region
    $region30: #{tpu_custom_call.1} parent=1 // pred_check
      _
    $region31: #{tpu_custom_call.1} parent=1 // pred_check_branch
      %60 = sbr.rel (0) target = $region33
    $region32: #{tpu_custom_call.1} parent=1 // pred_region
      %61 = dma.done [#allocation3], 256
    $region33: #{tpu_custom_call.1} parent=1 // pred_fallthru
      _
    // Predicated region
    $region34: #{tpu_custom_call.1} parent=1 // pred_check
      _
    $region35: #{tpu_custom_call.1} parent=1 // pred_check_branch
      %63 = sbr.rel (0) target = $region37
    $region36: #{tpu_custom_call.1} parent=1 // pred_region
      %64 = dma.done [#allocation6], 512
    $region37: #{tpu_custom_call.1} parent=1 // pred_fallthru
      _
    // Predicated region
    $region38: #{tpu_custom_call.1} parent=1 // pred_check
      _
    $region39: #{tpu_custom_call.1} parent=1 // pred_check_branch
      %66 = sbr.rel (0) target = $region41
    $region40: #{tpu_custom_call.1} parent=1 // pred_region
      %67 = dma.done [#allocation6], 512
    $region41: #{tpu_custom_call.1} parent=1 // pred_fallthru
      _
    %v68 = vld [vmem:[#allocation2] sm:$0xff]
    %v69 = vld [vmem:[#allocation2 + $0x8] sm:$0xff]
    %vm70 = vcmask 261120
    %v71 = vsel %vm70, %v68, 0.0
    %72 = vadd.xlane.f32.xlu0 %v71
    %v73 = vpop.xlane.xlu0 %72
    %v74 = vsel %vm70, %v69, 0.0
    %75 = vadd.xlane.f32.xlu0 %v74
    %v76 = vpop.xlane.xlu0 %75
    %v77 = vrcp.pop 32.0
    %v78 = vmul.f32 %v73, %v77
    %v79 = vmul.f32 %v76, %v77
    %v80 = vsub.f32 %v68, %v78
    %v81 = vsub.f32 %v69, %v79
    %v82 = vmul.f32 %v80, %v80
    %v83 = vmul.f32 %v81, %v81
    %v84 = vsel %vm70, %v82, 0.0
    %85 = vadd.xlane.f32.xlu0 %v84
    %v86 = vpop.xlane.xlu0 %85
    %v87 = vsel %vm70, %v83, 0.0
    %88 = vadd.xlane.f32.xlu0 %v87
    %v89 = vpop.xlane.xlu0 %88
    %v90 = vmul.f32 %v86, %v77
    %v91 = vmul.f32 %v89, %v77
    %v92 = vadd.f32 %v90, 1e-05
    %v93 = vadd.f32 %v91, 1e-05
    %v94 = vrsqrt.pop %v92
    %v95 = vrsqrt.pop %v93
    %v96 = vmul.f32 %v80, %v94
    %v97 = vmul.f32 %v81, %v95
    %v98 = vld [vmem:[%s1] sm:$0x1]
    %v100 = vlaneseq
    %v101 = vshrl.u32 %v100, 7
    %v102 = vsub.s32 0, %v101
    %v103 = vrot.slane %v98, %v102
    %v105 = vmul.f32 %v96, %v103
    %v106 = vmul.f32 %v97, %v103
    %v107 = vld [vmem:[%s2] sm:$0x1]
    %v109 = vlaneseq
    %v110 = vshrl.u32 %v109, 7
    %v111 = vsub.s32 0, %v110
    %v112 = vrot.slane %v107, %v111
    %v114 = vadd.f32 %v105, %v112
    %v115 = vadd.f32 %v106, %v112
    %v116 = vld [vmem:[#allocation5] sm:$0xff]
    %v117 = vld [vmem:[#allocation5 + $0x8] sm:$0xff]
    %v118 = vld [vmem:[#allocation5 + $0x10] sm:$0xff]
    %v119 = vld [vmem:[#allocation5 + $0x18] sm:$0xff]
    %v120 = vld [vmem:[%s4] sm:$0x1]
    %v122 = vlaneseq
    %v123 = vshrl.u32 %v122, 7
    %v124 = vsub.s32 0, %v123
    %v125 = vrot.slane %v120, %v124
    %v128 = vsel %vm70, %v114, 0
    %v131 = vsel %vm70, %v115, 0
    %v134 = vsel %vm70, %v116, 0
    %v137 = vsel %vm70, %v117, 0
    %v140 = vsel %vm70, %v118, 0
    %v143 = vsel %vm70, %v119, 0
    %145 = vmatprep.subr.mxu0 0.0
    %146 = vmatpush1.xpose.msra.mxu0 %v134
    %147 = vmatprep.subr.mxu0 0.0
    %148 = vmatpush1.xpose.msra.mxu0 %v137
    %149 = vmatprep.subr.mxu0 0.0
    %150 = vmatpush1.xpose.msra.mxu0 %v140
    %151 = vmatprep.subr.mxu0 0.0
    %152 = vmatpush1.xpose.msra.mxu0 %v143
    %153 = vmatprep.subr.mxu0 0.0
    %154 = vmatpush1.xpose.msra.mxu0 0.0
    %155 = vmatprep.subr.mxu0 0.0
    %156 = vmatpush1.xpose.msra.mxu0 0.0
    %157 = vmatprep.subr.mxu0 0.0
    %158 = vmatpush1.xpose.msra.mxu0 0.0
    %159 = vmatprep.subr.mxu0 0.0
    %160 = vmatpush1.xpose.msra.mxu0 0.0
    %161 = vmatprep.subr.mxu0 0.0
    %162 = vmatpush1.xpose.msra.mxu0 0.0
    %163 = vmatprep.subr.mxu0 0.0
    %164 = vmatpush1.xpose.msra.mxu0 0.0
    %165 = vmatprep.subr.mxu0 0.0
    %166 = vmatpush1.xpose.msra.mxu0 0.0
    %167 = vmatprep.subr.mxu0 0.0
    %168 = vmatpush1.xpose.msra.mxu0 0.0
    %169 = vmatprep.subr.mxu0 0.0
    %170 = vmatpush1.xpose.msra.mxu0 0.0
    %171 = vmatprep.subr.mxu0 0.0
    %172 = vmatpush1.xpose.msra.mxu0 0.0
    %173 = vmatprep.subr.mxu0 0.0
    %174 = vmatpush1.xpose.msra.mxu0 0.0
    %175 = vmatprep.subr.mxu0 0.0
    %176 = vmatpush1.xpose.msra.mxu0 0.0
    %177 = vmatprep.subr.mxu0 0.0
    %178 = vmatpush1.xpose.msra.mxu0 0.0
    %179 = vmatprep.subr.mxu0 0.0
    %180 = vmatpush1.xpose.msra.mxu0 0.0
    %181 = vmatprep.subr.mxu0 0.0
    %182 = vmatpush1.xpose.msra.mxu0 0.0
    %183 = vmatprep.subr.mxu0 0.0
    %184 = vmatpush1.xpose.msra.mxu0 0.0
    %185 = vmatprep.subr.mxu0 0.0
    %186 = vmatpush1.xpose.msra.mxu0 0.0
    %187 = vmatprep.subr.mxu0 0.0
    %188 = vmatpush1.xpose.msra.mxu0 0.0
    %189 = vmatprep.subr.mxu0 0.0
    %190 = vmatpush1.xpose.msra.mxu0 0.0
    %191 = vmatprep.subr.mxu0 0.0
    %192 = vmatpush1.xpose.msra.mxu0 0.0
    %193 = vmatprep.subr.mxu0 0.0
    %194 = vmatpush1.xpose.msra.mxu0 0.0
    %195 = vmatprep.subr.mxu0 0.0
    %196 = vmatpush1.xpose.msra.mxu0 0.0
    %197 = vmatprep.subr.mxu0 0.0
    %198 = vmatpush1.xpose.msra.mxu0 0.0
    %199 = vmatprep.subr.mxu0 0.0
    %200 = vmatpush1.xpose.msra.mxu0 0.0
    %201 = vmatprep.subr.mxu0 0.0
    %202 = vmatpush1.xpose.msra.mxu0 0.0
    %203 = vmatprep.subr.mxu0 0.0
    %204 = vmatpush1.xpose.msra.mxu0 0.0
    %205 = vmatprep.subr.mxu0 0.0
    %206 = vmatpush1.xpose.msra.mxu0 0.0
    %207 = vmatprep.subr.mxu0 0.0
    %208 = vmatpush1.xpose.msra.mxu0 0.0
    %209 = vmatprep.mubr.f32.mxu0 0.0
    %210 = vmatmul.mubr.f32.gmra.mrb[0].mxu0 %v128
    %v211 = vpop.f32.mrb[0].mxu0
    %v212 = vadd.f32 %v125, %v211
    %v213 = vpop.f32.mrb[0].mxu0
    %214 = vmatprep.mubr.f32.mxu0 0.0
    %215 = vmatmul.mubr.f32.gmra.mrb[0].mxu0 %v131
    %v216 = vpop.f32.mrb[0].mxu0
    %v217 = vadd.f32 %v125, %v216
    %v218 = vpop.f32.mrb[0].mxu0
    %219 = vdwg.mxu0
    %v220 = vmul.f32 %v212, 0.5
    %v221 = vmul.f32 %v217, 0.5
    %v222 = vmul.f32 %v212, 0.70710677
    %v223 = vmul.f32 %v217, 0.70710677
    %v224 = verf.f32.pop %v222
    %v225 = verf.f32.pop %v223
    %v226 = vadd.f32 %v224, 1.0
    %v227 = vadd.f32 %v225, 1.0
    %v228 = vmul.f32 %v220, %v226
    %v229 = vmul.f32 %v221, %v227
    %v230 = vld [vmem:[#allocation7] sm:$0xff]
    %v231 = vld [vmem:[#allocation7 + $0x8] sm:$0xff]
    %v232 = vld [vmem:[#allocation7 + $0x10] sm:$0xff]
    %v233 = vld [vmem:[#allocation7 + $0x18] sm:$0xff]
    %v234 = vld [vmem:[%s6] sm:$0x1]
    %v236 = vlaneseq
    %v237 = vshrl.u32 %v236, 7
    %v238 = vsub.s32 0, %v237
    %v239 = vrot.slane %v234, %v238
    %v242 = vsel %vm70, %v228, 0
    %v245 = vsel %vm70, %v229, 0
    %v248 = vsel %vm70, %v230, 0
    %v251 = vsel %vm70, %v231, 0
    %v254 = vsel %vm70, %v232, 0
    %v257 = vsel %vm70, %v233, 0
    %259 = vmatprep.subr.mxu0 0.0
    %260 = vmatpush1.xpose.msra.mxu0 %v248
    %261 = vmatprep.subr.mxu0 0.0
    %262 = vmatpush1.xpose.msra.mxu0 %v251
    %263 = vmatprep.subr.mxu0 0.0
    %264 = vmatpush1.xpose.msra.mxu0 %v254
    %265 = vmatprep.subr.mxu0 0.0
    %266 = vmatpush1.xpose.msra.mxu0 %v257
    %267 = vmatprep.subr.mxu0 0.0
    %268 = vmatpush1.xpose.msra.mxu0 0.0
    %269 = vmatprep.subr.mxu0 0.0
    %270 = vmatpush1.xpose.msra.mxu0 0.0
    %271 = vmatprep.subr.mxu0 0.0
    %272 = vmatpush1.xpose.msra.mxu0 0.0
    %273 = vmatprep.subr.mxu0 0.0
    %274 = vmatpush1.xpose.msra.mxu0 0.0
    %275 = vmatprep.subr.mxu0 0.0
    %276 = vmatpush1.xpose.msra.mxu0 0.0
    %277 = vmatprep.subr.mxu0 0.0
    %278 = vmatpush1.xpose.msra.mxu0 0.0
    %279 = vmatprep.subr.mxu0 0.0
    %280 = vmatpush1.xpose.msra.mxu0 0.0
    %281 = vmatprep.subr.mxu0 0.0
    %282 = vmatpush1.xpose.msra.mxu0 0.0
    %283 = vmatprep.subr.mxu0 0.0
    %284 = vmatpush1.xpose.msra.mxu0 0.0
    %285 = vmatprep.subr.mxu0 0.0
    %286 = vmatpush1.xpose.msra.mxu0 0.0
    %287 = vmatprep.subr.mxu0 0.0
    %288 = vmatpush1.xpose.msra.mxu0 0.0
    %289 = vmatprep.subr.mxu0 0.0
    %290 = vmatpush1.xpose.msra.mxu0 0.0
    %291 = vmatprep.subr.mxu0 0.0
    %292 = vmatpush1.xpose.msra.mxu0 0.0
    %293 = vmatprep.subr.mxu0 0.0
    %294 = vmatpush1.xpose.msra.mxu0 0.0
    %295 = vmatprep.subr.mxu0 0.0
    %296 = vmatpush1.xpose.msra.mxu0 0.0
    %297 = vmatprep.subr.mxu0 0.0
    %298 = vmatpush1.xpose.msra.mxu0 0.0
    %299 = vmatprep.subr.mxu0 0.0
    %300 = vmatpush1.xpose.msra.mxu0 0.0
    %301 = vmatprep.subr.mxu0 0.0
    %302 = vmatpush1.xpose.msra.mxu0 0.0
    %303 = vmatprep.subr.mxu0 0.0
    %304 = vmatpush1.xpose.msra.mxu0 0.0
    %305 = vmatprep.subr.mxu0 0.0
    %306 = vmatpush1.xpose.msra.mxu0 0.0
    %307 = vmatprep.subr.mxu0 0.0
    %308 = vmatpush1.xpose.msra.mxu0 0.0
    %309 = vmatprep.subr.mxu0 0.0
    %310 = vmatpush1.xpose.msra.mxu0 0.0
    %311 = vmatprep.subr.mxu0 0.0
    %312 = vmatpush1.xpose.msra.mxu0 0.0
    %313 = vmatprep.subr.mxu0 0.0
    %314 = vmatpush1.xpose.msra.mxu0 0.0
    %315 = vmatprep.subr.mxu0 0.0
    %316 = vmatpush1.xpose.msra.mxu0 0.0
    %317 = vmatprep.subr.mxu0 0.0
    %318 = vmatpush1.xpose.msra.mxu0 0.0
    %319 = vmatprep.subr.mxu0 0.0
    %320 = vmatpush1.xpose.msra.mxu0 0.0
    %321 = vmatprep.subr.mxu0 0.0
    %322 = vmatpush1.xpose.msra.mxu0 0.0
    %323 = vmatprep.mubr.f32.mxu0 0.0
    %324 = vmatmul.mubr.f32.gmra.mrb[0].mxu0 %v242
    %v325 = vpop.f32.mrb[0].mxu0
    %v326 = vadd.f32 %v239, %v325
    %v327 = vpop.f32.mrb[0].mxu0
    %328 = vmatprep.mubr.f32.mxu0 0.0
    %329 = vmatmul.mubr.f32.gmra.mrb[0].mxu0 %v245
    %v330 = vpop.f32.mrb[0].mxu0
    %v331 = vadd.f32 %v239, %v330
    %v332 = vpop.f32.mrb[0].mxu0
    %333 = vdwg.mxu0
    %v334 = vadd.f32 %v114, %v326
    %v335 = vadd.f32 %v115, %v331
    %336 = vst.msk [vmem:[#allocation8] sm:$0xff] %vm70, %v334
    %337 = vst.msk [vmem:[#allocation8 + $0x8] sm:$0xff] %vm70, %v335
    // Predicated region
    $region42: #{tpu_custom_call.1} parent=1 // pred_check
      _
    $region43: #{tpu_custom_call.1} parent=1 // pred_check_branch
      %339 = sbr.rel (0) target = $region45
    $region44: #{tpu_custom_call.1} parent=1 // pred_region
      %s341 = ssub.s32 256, 256
      %342 = vsyncadd [#allocation4], %s341
      %s343 = sshll.u32 [#allocation8], 4
      %s344 = int_to_ptr.vmem [resolvable:$true] %s343
      %349 = dma.vmem_to_hbm [thread:$0]  %s344, 256, %s7, [#allocation4], 128, 128, 8
    $region45: #{tpu_custom_call.1} parent=1 // pred_fallthru
      _
    // Predicated region
    $region46: #{tpu_custom_call.1} parent=1 // pred_check
      _
    $region47: #{tpu_custom_call.1} parent=1 // pred_check_branch
      %351 = sbr.rel (0) target = $region49
    $region48: #{tpu_custom_call.1} parent=1 // pred_region
      %352 = dma.done [#allocation4], 256
    $region49: #{tpu_custom_call.1} parent=1 // pred_fallthru
      _
    %353 = vsyncpa [#allocation3], 1
    %354 = vsyncpa [#allocation6], 1
    %355 = vsyncpa [#allocation4], 1

</llo_original>
